<compile_context>
chip_gen: v5e
topology: v5e:2x2
jax: 0.10.0
libtpu: 0.0.40
codegen_flags: <defaults>
</compile_context>

<pallas_src>
import jax
import jax.numpy as jnp
from jax.experimental import pallas as pl
from jax.experimental.pallas import tpu as pltpu


def _round_up(x: int, m: int) -> int:
    return ((x + m - 1) // m) * m


def _vmem_budget(block_bytes_override):
    """Per-logits-buffer budget (bytes) and scoped-VMEM limit for this chip."""
    try:
        cap = int(pltpu.get_tpu_info().vmem_capacity_bytes)
    except Exception:
        cap = 64 * 1024 * 1024  # conservative (v7x-sized) assumption
    vmem_limit = min(cap // 2, 64 * 1024 * 1024)       # 64 MiB v5e/v6e, 32 MiB v7x
    budget = min(12 * 1024 * 1024, vmem_limit // 4)    # double-buffered + headroom
    if block_bytes_override is not None:
        budget = int(block_bytes_override)
    return budget, vmem_limit


def _make_kernel(smoothing: float, num_classes: int, tile_c: int,
                 num_class_chunks: int, mask_cols: bool):
    confidence = 1.0 - smoothing
    uniform_w = smoothing / num_classes
    neg_inf = float("-inf")

    def kernel(x_ref, tgt_ref, out_ref, m_acc, l_acc, sx_acc, st_acc):
        c = pl.program_id(1)

        @pl.when(c == 0)
        def _init():
            m_acc[...] = jnp.full_like(m_acc, neg_inf)
            l_acc[...] = jnp.zeros_like(l_acc)
            sx_acc[...] = jnp.zeros_like(sx_acc)
            st_acc[...] = jnp.zeros_like(st_acc)

        x = x_ref[...].astype(jnp.float32)            # (TILE_N, TILE_C)
        tgt = tgt_ref[...]                            # (TILE_N, 1) int32

        # Chunk-local class index; shift the target / validity limit instead of
        # the per-element iota (column-wise ops are cheaper than per-element).
        local_col = jax.lax.broadcasted_iota(jnp.int32, x.shape, 1)
        tgt_local = tgt - c * tile_c                  # (TILE_N, 1)

        if mask_cols:
            limit = num_classes - c * tile_c          # scalar
            valid = local_col < limit
            x_exp_in = jnp.where(valid, x, neg_inf)
            x_sum_in = jnp.where(valid, x, 0.0)
        else:
            x_exp_in = x
            x_sum_in = x

        # Online (chunked) numerically-stable logsumexp.
        m_chunk = jnp.max(x_exp_in, axis=-1, keepdims=True)
        m_new = jnp.maximum(m_acc[...], m_chunk)
        l_acc[...] = (l_acc[...] * jnp.exp(m_acc[...] - m_new)
                      + jnp.sum(jnp.exp(x_exp_in - m_new), axis=-1, keepdims=True))
        m_acc[...] = m_new

        # Linear-in-x terms need no max shift: plain running sums.
        sx_acc[...] += jnp.sum(x_sum_in, axis=-1, keepdims=True)
        st_acc[...] += jnp.sum(jnp.where(local_col == tgt_local, x, 0.0),
                               axis=-1, keepdims=True)

        @pl.when(c == num_class_chunks - 1)
        def _finalize():
            # loss = logsumexp(x) - [confidence * x_target + (smoothing/C) * sum(x)]
            z = m_acc[...] + jnp.log(l_acc[...])
            weighted = uniform_w * sx_acc[...] + confidence * st_acc[...]
            out_ref[...] = z - weighted

    return kernel


def label_smoothing_cross_entropy(x, target, smoothing: float = 0.1, *,
                                  block_bytes=None):
    """Pallas-TPU forward matching PyTorch LabelSmoothingCrossEntropy."""
    N, C = x.shape
    db = jnp.dtype(x.dtype).itemsize
    budget, vmem_limit = _vmem_budget(block_bytes)

    # ---- class (lane) tiling ----
    if 8 * C * db <= budget:
        tile_c = C                                    # single chunk, full width
    else:
        tile_c = max(128, min(budget // (8 * db), 8192) // 128 * 128)
        tile_c = min(tile_c, _round_up(C, 128))
    num_chunks = pl.cdiv(C, tile_c)
    mask_cols = (C % tile_c) != 0                     # last chunk has OOB lanes

    # ---- row (sublane) tiling ----
    rows = budget // max(1, tile_c * db)
    rows = max(8, (rows // 8) * 8)
    # Keep >= ~4 grid steps when the batch allows it (v7x: both TensorCores).
    min_steps = min(4, pl.cdiv(N, 8))
    rows = min(rows, max(8, _round_up(pl.cdiv(N, min_steps), 8)))
    tile_n = min(rows, _round_up(N, 8))
    num_row_tiles = pl.cdiv(N, tile_n)

    tgt = target.astype(jnp.int32).reshape(N, 1)

    per_row = pl.pallas_call(
        _make_kernel(smoothing, C, tile_c, num_chunks, mask_cols),
        out_shape=jax.ShapeDtypeStruct((N, 1), jnp.float32),
        grid=(num_row_tiles, num_chunks),
        in_specs=[
            pl.BlockSpec((tile_n, tile_c), lambda i, c: (i, c)),  # logits tile
            pl.BlockSpec((tile_n, 1), lambda i, c: (i, 0)),       # targets tile
        ],
        out_specs=pl.BlockSpec((tile_n, 1), lambda i, c: (i, 0)),
        scratch_shapes=[pltpu.VMEM((tile_n, 1), jnp.float32)] * 4,  # m, l, sx, st
        compiler_params=pltpu.CompilerParams(
            dimension_semantics=("parallel", "arbitrary"),
            vmem_limit_bytes=vmem_limit),
        cost_estimate=pl.CostEstimate(
            flops=6 * N * C,
            transcendentals=N * C,
            bytes_accessed=N * C * db + 2 * N * 4),
    )(x, tgt)

    # Tiny batch mean stays in XLA.
    return jnp.mean(per_row)


def _reference(x, target, smoothing: float = 0.1):
    confidence = 1.0 - smoothing
    logprobs = jax.nn.log_softmax(x.astype(jnp.float32), axis=-1)
    nll = -jnp.take_along_axis(
        logprobs, target[:, None].astype(jnp.int32), axis=-1)[:, 0]
    smooth = -jnp.mean(logprobs, axis=-1)
    return jnp.mean(confidence * nll + smoothing * smooth)


if __name__ == "__main__":
    key = jax.random.PRNGKey(0)
    k = jax.random.split(key, 6)

    # Primary demo shape: batch=8, 32 classes.
    x = jax.random.normal(k[0], (8, 32), dtype=jnp.float32)
    t = jax.random.randint(k[1], (8,), 0, 32, dtype=jnp.int32)
    loss = jax.block_until_ready(label_smoothing_cross_entropy(x, t, 0.1))
    ref = _reference(x, t, 0.1)
    assert jnp.allclose(loss, ref, atol=1e-5, rtol=1e-5), (loss, ref)

    # Ragged batch: partial last row tile, handled by grid masking (no jnp.pad).
    x2 = jax.random.normal(k[2], (13, 48), dtype=jnp.float32)
    t2 = jax.random.randint(k[3], (13,), 0, 48, dtype=jnp.int32)
    loss2 = jax.block_until_ready(label_smoothing_cross_entropy(x2, t2, 0.1))
    ref2 = _reference(x2, t2, 0.1)
    assert jnp.allclose(loss2, ref2, atol=1e-5, rtol=1e-5), (loss2, ref2)

    # Class-chunked online-logsumexp path (forced small block budget):
    # tile_c=256 over C=640 -> 3 chunks, masked last chunk, 3 row tiles.
    x3 = jax.random.normal(k[4], (20, 640), dtype=jnp.float32)
    t3 = jax.random.randint(k[5], (20,), 0, 640, dtype=jnp.int32)
    loss3 = jax.block_until_ready(
        label_smoothing_cross_entropy(x3, t3, 0.1, block_bytes=8 * 1024))
    ref3 = _reference(x3, t3, 0.1)
    assert jnp.allclose(loss3, ref3, atol=1e-5, rtol=1e-5), (loss3, ref3)

    print("KERNEL_OK")
</pallas_src>

<mosaic_0001>
module attributes {stable_mosaic.version = 11 : i64} {
  func.func @kernel(%arg0: i32, %arg1: i32, %arg2: memref<8x32xf32, #tpu.memory_space<vmem>>, %arg3: memref<8x1xi32, #tpu.memory_space<vmem>>, %arg4: memref<8x1xf32, #tpu.memory_space<vmem>>, %arg5: memref<8x1xf32, #tpu.memory_space<vmem>>, %arg6: memref<8x1xf32, #tpu.memory_space<vmem>>, %arg7: memref<8x1xf32, #tpu.memory_space<vmem>>, %arg8: memref<8x1xf32, #tpu.memory_space<vmem>>) attributes {dimension_semantics = [#tpu.dimension_semantics<parallel>, #tpu.dimension_semantics<arbitrary>], iteration_bounds = array<i64: 1, 1>, scalar_prefetch = 0 : i64, scratch_operands = 4 : i64, tpu.core_type = #tpu.core_type<tc>, window_params = [{transform_indices = @transform_0, window_bounds = array<i64: 8, 32>}, {transform_indices = @transform_1, window_bounds = array<i64: 8, 1>}, {transform_indices = @transform_2, window_bounds = array<i64: 8, 1>}]} {
    %c0_i32 = arith.constant 0 : i32
    %0 = arith.cmpi eq, %arg1, %c0_i32 : i32
    %1 = arith.extui %0 : i1 to i32
    %c0_i32_0 = arith.constant 0 : i32
    %2 = arith.cmpi ne, %1, %c0_i32_0 : i32
    scf.if %2 {
      %cst_28 = arith.constant 0xFF800000 : f32
      %43 = vector.broadcast %cst_28 : f32 to vector<8x1xf32>
      %c0_29 = arith.constant 0 : index
      %c0_30 = arith.constant 0 : index
      %44 = vector.load %arg5[%c0_29, %c0_30] : memref<8x1xf32, #tpu.memory_space<vmem>>, vector<8x1xf32>
      tpu.vector_store %arg5[%c0_29, %c0_30], %43 {strides = array<i32>} : memref<8x1xf32, #tpu.memory_space<vmem>>, vector<8x1xf32>,
      %cst_31 = arith.constant 0.000000e+00 : f32
      %45 = vector.broadcast %cst_31 : f32 to vector<8x1xf32>
      %c0_32 = arith.constant 0 : index
      %c0_33 = arith.constant 0 : index
      %46 = vector.load %arg6[%c0_32, %c0_33] : memref<8x1xf32, #tpu.memory_space<vmem>>, vector<8x1xf32>
      tpu.vector_store %arg6[%c0_32, %c0_33], %45 {strides = array<i32>} : memref<8x1xf32, #tpu.memory_space<vmem>>, vector<8x1xf32>,
      %cst_34 = arith.constant 0.000000e+00 : f32
      %47 = vector.broadcast %cst_34 : f32 to vector<8x1xf32>
      %c0_35 = arith.constant 0 : index
      %c0_36 = arith.constant 0 : index
      %48 = vector.load %arg7[%c0_35, %c0_36] : memref<8x1xf32, #tpu.memory_space<vmem>>, vector<8x1xf32>
      tpu.vector_store %arg7[%c0_35, %c0_36], %47 {strides = array<i32>} : memref<8x1xf32, #tpu.memory_space<vmem>>, vector<8x1xf32>,
      %cst_37 = arith.constant 0.000000e+00 : f32
      %49 = vector.broadcast %cst_37 : f32 to vector<8x1xf32>
      %c0_38 = arith.constant 0 : index
      %c0_39 = arith.constant 0 : index
      %50 = vector.load %arg8[%c0_38, %c0_39] : memref<8x1xf32, #tpu.memory_space<vmem>>, vector<8x1xf32>
      tpu.vector_store %arg8[%c0_38, %c0_39], %49 {strides = array<i32>} : memref<8x1xf32, #tpu.memory_space<vmem>>, vector<8x1xf32>,
    } else {
    }
    %c0 = arith.constant 0 : index
    %c0_1 = arith.constant 0 : index
    %3 = vector.load %arg2[%c0, %c0_1] : memref<8x32xf32, #tpu.memory_space<vmem>>, vector<8x32xf32>
    %c0_2 = arith.constant 0 : index
    %c0_3 = arith.constant 0 : index
    %4 = vector.load %arg3[%c0_2, %c0_3] : memref<8x1xi32, #tpu.memory_space<vmem>>, vector<8x1xi32>
    %5 = tpu.iota {dimensions = array<i32: 1>} : vector<8x32xi32>
    %c32_i32 = arith.constant 32 : i32
    %6 = arith.muli %arg1, %c32_i32 : i32
    %7 = vector.broadcast %6 : i32 to vector<8x1xi32>
    %8 = arith.subi %4, %7 : vector<8x1xi32>
    %cst = arith.constant dense<0xFF800000> : vector<8xf32>
    %9 = vector.multi_reduction <maximumf>, %3, %cst [1] : vector<8x32xf32> to vector<8xf32>
    %10 = vector.shape_cast %9 : vector<8xf32> to vector<8x1xf32>
    %c0_4 = arith.constant 0 : index
    %c0_5 = arith.constant 0 : index
    %11 = vector.load %arg5[%c0_4, %c0_5] : memref<8x1xf32, #tpu.memory_space<vmem>>, vector<8x1xf32>
    %12 = arith.maximumf %11, %10 : vector<8x1xf32>
    %c0_6 = arith.constant 0 : index
    %c0_7 = arith.constant 0 : index
    %13 = vector.load %arg6[%c0_6, %c0_7] : memref<8x1xf32, #tpu.memory_space<vmem>>, vector<8x1xf32>
    %c0_8 = arith.constant 0 : index
    %c0_9 = arith.constant 0 : index
    %14 = vector.load %arg5[%c0_8, %c0_9] : memref<8x1xf32, #tpu.memory_space<vmem>>, vector<8x1xf32>
    %15 = arith.subf %14, %12 : vector<8x1xf32>
    %16 = math.exp %15 : vector<8x1xf32>
    %17 = arith.mulf %13, %16 : vector<8x1xf32>
    %18 = vector.broadcast %12 : vector<8x1xf32> to vector<8x32xf32>
    %19 = arith.subf %3, %18 : vector<8x32xf32>
    %20 = math.exp %19 : vector<8x32xf32>
    %cst_10 = arith.constant dense<0.000000e+00> : vector<8xf32>
    %21 = vector.multi_reduction <add>, %20, %cst_10 [1] : vector<8x32xf32> to vector<8xf32>
    %22 = vector.shape_cast %21 : vector<8xf32> to vector<8x1xf32>
    %23 = arith.addf %17, %22 : vector<8x1xf32>
    %c0_11 = arith.constant 0 : index
    %c0_12 = arith.constant 0 : index
    %24 = vector.load %arg6[%c0_11, %c0_12] : memref<8x1xf32, #tpu.memory_space<vmem>>, vector<8x1xf32>
    tpu.vector_store %arg6[%c0_11, %c0_12], %23 {strides = array<i32>} : memref<8x1xf32, #tpu.memory_space<vmem>>, vector<8x1xf32>,
    %c0_13 = arith.constant 0 : index
    %c0_14 = arith.constant 0 : index
    %25 = vector.load %arg5[%c0_13, %c0_14] : memref<8x1xf32, #tpu.memory_space<vmem>>, vector<8x1xf32>
    tpu.vector_store %arg5[%c0_13, %c0_14], %12 {strides = array<i32>} : memref<8x1xf32, #tpu.memory_space<vmem>>, vector<8x1xf32>,
    %c0_15 = arith.constant 0 : index
    %c0_16 = arith.constant 0 : index
    %26 = vector.load %arg7[%c0_15, %c0_16] : memref<8x1xf32, #tpu.memory_space<vmem>>, vector<8x1xf32>
    %cst_17 = arith.constant dense<0.000000e+00> : vector<8xf32>
    %27 = vector.multi_reduction <add>, %3, %cst_17 [1] : vector<8x32xf32> to vector<8xf32>
    %28 = vector.shape_cast %27 : vector<8xf32> to vector<8x1xf32>
    %29 = arith.addf %26, %28 : vector<8x1xf32>
    %c0_18 = arith.constant 0 : index
    %c0_19 = arith.constant 0 : index
    %30 = vector.load %arg7[%c0_18, %c0_19] : memref<8x1xf32, #tpu.memory_space<vmem>>, vector<8x1xf32>
    tpu.vector_store %arg7[%c0_18, %c0_19], %29 {strides = array<i32>} : memref<8x1xf32, #tpu.memory_space<vmem>>, vector<8x1xf32>,
    %c0_20 = arith.constant 0 : index
    %c0_21 = arith.constant 0 : index
    %31 = vector.load %arg8[%c0_20, %c0_21] : memref<8x1xf32, #tpu.memory_space<vmem>>, vector<8x1xf32>
    %32 = vector.broadcast %8 : vector<8x1xi32> to vector<8x32xi32>
    %33 = arith.cmpi eq, %5, %32 : vector<8x32xi32>
    %cst_22 = arith.constant 0.000000e+00 : f32
    %34 = vector.broadcast %cst_22 : f32 to vector<8x32xf32>
    %35 = arith.select %33, %3, %34 : vector<8x32xi1>, vector<8x32xf32>
    %cst_23 = arith.constant dense<0.000000e+00> : vector<8xf32>
    %36 = vector.multi_reduction <add>, %35, %cst_23 [1] : vector<8x32xf32> to vector<8xf32>
    %37 = vector.shape_cast %36 : vector<8xf32> to vector<8x1xf32>
    %38 = arith.addf %31, %37 : vector<8x1xf32>
    %c0_24 = arith.constant 0 : index
    %c0_25 = arith.constant 0 : index
    %39 = vector.load %arg8[%c0_24, %c0_25] : memref<8x1xf32, #tpu.memory_space<vmem>>, vector<8x1xf32>
    tpu.vector_store %arg8[%c0_24, %c0_25], %38 {strides = array<i32>} : memref<8x1xf32, #tpu.memory_space<vmem>>, vector<8x1xf32>,
    %c0_i32_26 = arith.constant 0 : i32
    %40 = arith.cmpi eq, %arg1, %c0_i32_26 : i32
    %41 = arith.extui %40 : i1 to i32
    %c0_i32_27 = arith.constant 0 : i32
    %42 = arith.cmpi ne, %41, %c0_i32_27 : i32
    scf.if %42 {
      %c0_28 = arith.constant 0 : index
      %c0_29 = arith.constant 0 : index
      %43 = vector.load %arg5[%c0_28, %c0_29] : memref<8x1xf32, #tpu.memory_space<vmem>>, vector<8x1xf32>
      %c0_30 = arith.constant 0 : index
      %c0_31 = arith.constant 0 : index
      %44 = vector.load %arg6[%c0_30, %c0_31] : memref<8x1xf32, #tpu.memory_space<vmem>>, vector<8x1xf32>
      %45 = math.log %44 : vector<8x1xf32>
      %46 = arith.addf %43, %45 : vector<8x1xf32>
      %c0_32 = arith.constant 0 : index
      %c0_33 = arith.constant 0 : index
      %47 = vector.load %arg7[%c0_32, %c0_33] : memref<8x1xf32, #tpu.memory_space<vmem>>, vector<8x1xf32>
      %cst_34 = arith.constant 3.125000e-03 : f32
      %48 = vector.broadcast %cst_34 : f32 to vector<8x1xf32>
      %49 = arith.mulf %48, %47 : vector<8x1xf32>
      %c0_35 = arith.constant 0 : index
      %c0_36 = arith.constant 0 : index
      %50 = vector.load %arg8[%c0_35, %c0_36] : memref<8x1xf32, #tpu.memory_space<vmem>>, vector<8x1xf32>
      %cst_37 = arith.constant 0.899999976 : f32
      %51 = vector.broadcast %cst_37 : f32 to vector<8x1xf32>
      %52 = arith.mulf %51, %50 : vector<8x1xf32>
      %53 = arith.addf %49, %52 : vector<8x1xf32>
      %54 = arith.subf %46, %53 : vector<8x1xf32>
      %c0_38 = arith.constant 0 : index
      %c0_39 = arith.constant 0 : index
      %55 = vector.load %arg4[%c0_38, %c0_39] : memref<8x1xf32, #tpu.memory_space<vmem>>, vector<8x1xf32>
      tpu.vector_store %arg4[%c0_38, %c0_39], %54 {strides = array<i32>} : memref<8x1xf32, #tpu.memory_space<vmem>>, vector<8x1xf32>,
    } else {
    }
    return
  }
  func.func @transform_0(%arg0: i32, %arg1: i32) -> (i32, i32) {
    %c0_i32 = arith.constant 0 : i32
    return %arg0, %arg1 : i32, i32
  }
  func.func @transform_1(%arg0: i32, %arg1: i32) -> (i32, i32) {
    %c0_i32 = arith.constant 0 : i32
    %c0_i32_0 = arith.constant 0 : i32
    return %arg0, %c0_i32 : i32, i32
  }
  func.func @transform_2(%arg0: i32, %arg1: i32) -> (i32, i32) {
    %c0_i32 = arith.constant 0 : i32
    %c0_i32_0 = arith.constant 0 : i32
    return %arg0, %c0_i32 : i32, i32
  }
}

</mosaic_0001>

<llo_original>
// kernel: tpu_custom_call.1
$region0: #{tpu_custom_call.1}
  #allocation0 [shape = 'u32[]', space=smem, size = 0x4, offset = 0x4, fixed_abs, tag = 'smem constant byte address 0x4 - core index']
  #allocation1 [shape = 'u32[72,128]{1,0:T(1,128)}', space=vmem, size = 0x9000, scoped, tag = 'internal scratch']
  #allocation2 [shape = 'f32[8,1]{1,0:T(8,128)}', space=vmem, size = 0x1000, scoped, tag = 'scratch operand']
  #allocation3 [shape = 'f32[8,1]{1,0:T(8,128)}', space=vmem, size = 0x1000, scoped, tag = 'scratch operand']
  #allocation4 [shape = 'f32[8,1]{1,0:T(8,128)}', space=vmem, size = 0x1000, scoped, tag = 'scratch operand']
  #allocation5 [shape = 'f32[8,1]{1,0:T(8,128)}', space=vmem, size = 0x1000, scoped, tag = 'scratch operand']
  %s0 = inlined_call_operand.vmem [shape: f32[8,32], index: 0, kind: input, shape index: {}]
  %s1 = inlined_call_operand.vmem [shape: s32[8,1], index: 1, kind: input, shape index: {}]
  %s2 = inlined_call_operand.vmem [shape: f32[8,1], index: 2, kind: output, shape index: {}]
  %s3 = sld [smem:[#allocation0]]
  $region26: #{tpu_custom_call.1} parent=0
    _
  %s5 = ssub.s32 1, %s3
  %s6 = scalar_select 0, %s5, %s3
  // Predicated region
  $region2: #{tpu_custom_call.1} parent=0 // pred_check
    _
  $region3: #{tpu_custom_call.1} parent=0 // pred_check_branch
    %8 = sbr.rel (0) target = $region5
  $region4: #{tpu_custom_call.1} parent=0 // pred_region
    _
  $region5: #{tpu_custom_call.1} parent=0 // pred_fallthru
    _
  // Predicated region
  $region6: #{tpu_custom_call.1} parent=0 // pred_check
    _
  $region7: #{tpu_custom_call.1} parent=0 // pred_check_branch
    %10 = sbr.rel (0) target = $region9
  $region8: #{tpu_custom_call.1} parent=0 // pred_region
    _
  $region9: #{tpu_custom_call.1} parent=0 // pred_fallthru
    _
  %p11 = scmp.eq.s32.totalorder 0, 0
  // Predicated region
  $region10: #{tpu_custom_call.1} parent=0 // pred_check
    %p12 = pneg %p11
  $region11: #{tpu_custom_call.1} parent=0 // pred_check_branch
    %14 = sbr.rel (%p12) target = $region13
  $region12: #{tpu_custom_call.1} parent=0 // pred_region
    %vm15 = vcmask 7168
    %16 = vst.msk [vmem:[#allocation2] sm:$0xff] %vm15, -inf
    %17 = vst.msk [vmem:[#allocation3] sm:$0xff] %vm15, 0.0
    %18 = vst.msk [vmem:[#allocation4] sm:$0xff] %vm15, 0.0
    %19 = vst.msk [vmem:[#allocation5] sm:$0xff] %vm15, 0.0
  $region13: #{tpu_custom_call.1} parent=0 // pred_fallthru
    _
  %v20 = vld [vmem:[%s0] sm:$0xff]
  %v21 = vld [vmem:[%s1] sm:$0xff]
  %v22 = vlaneseq
  %v23 = vand.u32 %v22, 127
  %s24 = smul.u32 0, 32
  %v25 = vstv %s24
  %v26 = vsub.s32 %v21, %v25
  %vm27 = vcmask 261120
  %v28 = vsel %vm27, %v20, -inf
  %29 = vmax.xlane.f32.xlu0 %v28
  %v30 = vpop.xlane.xlu0 %29
  %v31 = vld [vmem:[#allocation2] sm:$0xff]
  %v32 = vmax.f32 %v31, %v30
  %v33 = vld [vmem:[#allocation3] sm:$0xff]
  %v34 = vsub.f32 %v31, %v32
  %v35 = vmul.f32 %v34, 1.442695
  %v36 = vpow.pop %v35
  %v37 = vmul.f32 %v33, %v36
  %39 = vset.pattern.permute.xlu0 0
  %40 = vperm.xlu0 %39, %v32
  %v41 = vpop.permute.xlu0 %40
  %v43 = vsub.f32 %v20, %v41
  %v44 = vmul.f32 %v43, 1.442695
  %v45 = vpow.pop %v44
  %v46 = vsel %vm27, %v45, 0.0
  %47 = vadd.xlane.f32.xlu0 %v46
  %v48 = vpop.xlane.xlu0 %47
  %v49 = vadd.f32 %v37, %v48
  %vm50 = vcmask 7168
  %51 = vst.msk [vmem:[#allocation3] sm:$0xff] %vm50, %v49
  %52 = vst.msk [vmem:[#allocation2] sm:$0xff] %vm50, %v32
  %v53 = vld [vmem:[#allocation4] sm:$0xff]
  %v54 = vsel %vm27, %v20, 0.0
  %55 = vadd.xlane.f32.xlu0 %v54
  %v56 = vpop.xlane.xlu0 %55
  %v57 = vadd.f32 %v53, %v56
  %58 = vst.msk [vmem:[#allocation4] sm:$0xff] %vm50, %v57
  %v59 = vld [vmem:[#allocation5] sm:$0xff]
  %60 = vset.pattern.permute.xlu0 0
  %61 = vperm.xlu0 %60, %v26
  %v62 = vpop.permute.xlu0 %61
  %vm63 = vcmp.eq.s32.totalorder %v23, %v62
  %v64 = vsel %vm63, %v20, 0.0
  %v65 = vsel %vm27, %v64, 0.0
  %66 = vadd.xlane.f32.xlu0 %v65
  %v67 = vpop.xlane.xlu0 %66
  %v68 = vadd.f32 %v59, %v67
  %69 = vst.msk [vmem:[#allocation5] sm:$0xff] %vm50, %v68
  // Predicated region
  $region14: #{tpu_custom_call.1} parent=0 // pred_check
    %p70 = pneg %p11
  $region15: #{tpu_custom_call.1} parent=0 // pred_check_branch
    %72 = sbr.rel (%p70) target = $region17
  $region16: #{tpu_custom_call.1} parent=0 // pred_region
    %v73 = vld [vmem:[#allocation2] sm:$0xff]
    %v74 = vld [vmem:[#allocation3] sm:$0xff]
    %v75 = vlog2.pop %v74
    %v76 = vmul.f32 %v75, 0.6931472
    %v77 = vadd.f32 %v73, %v76
    %v78 = vld [vmem:[#allocation4] sm:$0xff]
    %v79 = vmul.f32 %v78, 0.003125
    %v80 = vld [vmem:[#allocation5] sm:$0xff]
    %v81 = vmul.f32 %v80, 0.9
    %v82 = vadd.f32 %v79, %v81
    %v83 = vsub.f32 %v77, %v82
    %84 = vst.msk [vmem:[%s2] sm:$0xff] %vm50, %v83
  $region17: #{tpu_custom_call.1} parent=0 // pred_fallthru
    _
  // Predicated region
  $region18: #{tpu_custom_call.1} parent=0 // pred_check
    _
  $region19: #{tpu_custom_call.1} parent=0 // pred_check_branch
    %86 = sbr.rel (0) target = $region21
  $region20: #{tpu_custom_call.1} parent=0 // pred_region
    _
  $region21: #{tpu_custom_call.1} parent=0 // pred_fallthru
    _
  // Predicated region
  $region22: #{tpu_custom_call.1} parent=0 // pred_check
    _
  $region23: #{tpu_custom_call.1} parent=0 // pred_check_branch
    %88 = sbr.rel (0) target = $region25
  $region24: #{tpu_custom_call.1} parent=0 // pred_region
    _
  $region25: #{tpu_custom_call.1} parent=0 // pred_fallthru
    _

</llo_original>
